<compile_context>
chip_gen: v6e
topology: v6e:2x2x1
jax: 0.10.0
libtpu: 0.0.40
codegen_flags: <defaults>
</compile_context>

<pallas_src>
import functools

import jax
import jax.numpy as jnp
from jax.experimental import pallas as pl
from jax.experimental.pallas import tpu as pltpu


def _audio_linear_kernel(x_ref, w_ref, b_ref, o_ref):
    """One (tm, tn) output tile: o = relu(x @ W + b), single shot (no K loop)."""
    y = jnp.dot(x_ref[...], w_ref[...], preferred_element_type=jnp.float32)
    y = y + b_ref[...]                      # (1, tn) bias broadcast over rows
    o_ref[...] = jnp.maximum(y, 0.0).astype(o_ref.dtype)


def _round_up(a, b):
    return ((a + b - 1) // b) * b


@functools.partial(jax.jit, static_argnames=("tm", "tn", "compute_dtype"))
def audio_linear(x, weight, bias, *, tm=128, tn=None, compute_dtype=None):
    """relu(x @ weight + bias).

    x:      (..., 512)   float32
    weight: (512, nhid)  float32   (native layout, i.e. transpose of torch fc2.weight)
    bias:   (nhid,)      float32
    returns (..., nhid)  float32
    """
    K, N = weight.shape
    lead = x.shape[:-1]
    M = 1
    for d in lead:
        M *= d
    x2d = x.reshape(M, K)
    out_dtype = x.dtype

    # ---- M tiling: big tiles for real batches, no huge padding for tiny demos.
    tm_eff = min(tm, _round_up(M, 8))
    tm_eff = max(8, _round_up(tm_eff, 8))
    M_pad = _round_up(M, tm_eff)

    # ---- N tiling: lane-dense (multiple of 128); tile when nhid is large.
    N_pad = _round_up(N, 128)
    if tn is None:
        tn_eff = N_pad if N_pad <= 2048 else 512
    else:
        tn_eff = _round_up(tn, 128)
    N_pad = _round_up(N_pad, tn_eff)

    # ---- zero-pad operands (padded rows/cols are sliced off at the end).
    if M_pad != M:
        x2d = jnp.pad(x2d, ((0, M_pad - M), (0, 0)))
    w2d = weight
    b2d = bias.reshape(1, N)
    if N_pad != N:
        w2d = jnp.pad(w2d, ((0, 0), (0, N_pad - N)))
        b2d = jnp.pad(b2d, ((0, 0), (0, N_pad - N)))

    # ---- optional bf16 MXU path (accumulate stays f32 inside the kernel).
    if compute_dtype is not None:
        x2d = x2d.astype(compute_dtype)
        w2d = w2d.astype(compute_dtype)
    b2d = b2d.astype(jnp.float32)

    grid = (N_pad // tn_eff, M_pad // tm_eff)   # N-tile OUTER => weight resident over M sweep

    out = pl.pallas_call(
        _audio_linear_kernel,
        out_shape=jax.ShapeDtypeStruct((M_pad, N_pad), out_dtype),
        grid_spec=pltpu.PrefetchScalarGridSpec(
            num_scalar_prefetch=0,
            grid=grid,
            in_specs=[
                pl.BlockSpec((tm_eff, K), lambda j, i: (i, 0)),   # x: streamed over M
                pl.BlockSpec((K, tn_eff), lambda j, i: (0, j)),   # W: resident per N-tile
                pl.BlockSpec((1, tn_eff), lambda j, i: (0, j)),   # bias: resident per N-tile
            ],
            out_specs=pl.BlockSpec((tm_eff, tn_eff), lambda j, i: (i, j)),
        ),
        compiler_params=pltpu.CompilerParams(
            dimension_semantics=("parallel", "parallel"),
        ),
    )(x2d, w2d, b2d)

    out = out[:M, :N]
    return out.reshape(*lead, N)


def init_audio_linear_params(key, nhid, in_features=512):
    """Xavier-uniform weight (stored natively as (in, out)), zero bias (matches init_layer)."""
    limit = jnp.sqrt(6.0 / (in_features + nhid))
    weight = jax.random.uniform(
        key, (in_features, nhid), minval=-limit, maxval=limit, dtype=jnp.float32
    )
    bias = jnp.zeros((nhid,), jnp.float32)
    return weight, bias


if __name__ == "__main__":
    key = jax.random.PRNGKey(0)
    k_x, k_w = jax.random.split(key)

    B, T, IN, NHID = 2, 8, 512, 128
    x = jax.random.normal(k_x, (B, T, IN), dtype=jnp.float32)
    weight, bias = init_audio_linear_params(k_w, NHID, IN)

    y_ref = jnp.maximum(x.reshape(-1, IN) @ weight + bias, 0.0).reshape(B, T, NHID)

    # f32 path — tight check
    y = audio_linear(x, weight, bias)
    jax.block_until_ready(y)
    assert y.shape == (B, T, NHID)
    assert jnp.allclose(y, y_ref, atol=1e-5, rtol=1e-5)

    # bf16 MXU path (v6e/v7x-oriented) — looser tolerance
    y_bf16 = audio_linear(x, weight, bias, compute_dtype=jnp.bfloat16)
    jax.block_until_ready(y_bf16)
    assert jnp.allclose(y_bf16, y_ref, atol=5e-2, rtol=5e-2)

    print("KERNEL_OK")
</pallas_src>

<mosaic_0001>
module attributes {stable_mosaic.version = 11 : i64} {
  func.func @_audio_linear_kernel(%arg0: i32, %arg1: i32, %arg2: memref<16x512xf32, #tpu.memory_space<vmem>>, %arg3: memref<512x128xf32, #tpu.memory_space<vmem>>, %arg4: memref<1x128xf32, #tpu.memory_space<vmem>>, %arg5: memref<16x128xf32, #tpu.memory_space<vmem>>) attributes {dimension_semantics = [#tpu.dimension_semantics<parallel>, #tpu.dimension_semantics<parallel>], iteration_bounds = array<i64: 1, 1>, scalar_prefetch = 0 : i64, scratch_operands = 0 : i64, tpu.core_type = #tpu.core_type<tc>, window_params = [{transform_indices = @transform_0, window_bounds = array<i64: 16, 512>}, {transform_indices = @transform_1, window_bounds = array<i64: 512, 128>}, {transform_indices = @transform_2, window_bounds = array<i64: 1, 128>}, {transform_indices = @transform_3, window_bounds = array<i64: 16, 128>}]} {
    %c0 = arith.constant 0 : index
    %c0_0 = arith.constant 0 : index
    %0 = vector.load %arg2[%c0, %c0_0] : memref<16x512xf32, #tpu.memory_space<vmem>>, vector<16x512xf32>
    %c0_1 = arith.constant 0 : index
    %c0_2 = arith.constant 0 : index
    %1 = vector.load %arg3[%c0_1, %c0_2] : memref<512x128xf32, #tpu.memory_space<vmem>>, vector<512x128xf32>
    %cst = arith.constant dense<0.000000e+00> : vector<16x128xf32>
    %2 = tpu.matmul %0, %1, %cst {dimension_numbers = #tpu.dot_dimension_numbers<[1], [0], [0], [1], [0, 0, 1, 1], [], []>} : vector<16x512xf32>, vector<512x128xf32>, vector<16x128xf32> -> vector<16x128xf32>
    %c0_3 = arith.constant 0 : index
    %c0_4 = arith.constant 0 : index
    %3 = vector.load %arg4[%c0_3, %c0_4] : memref<1x128xf32, #tpu.memory_space<vmem>>, vector<1x128xf32>
    %4 = vector.broadcast %3 : vector<1x128xf32> to vector<16x128xf32>
    %5 = arith.addf %2, %4 : vector<16x128xf32>
    %cst_5 = arith.constant 0.000000e+00 : f32
    %6 = vector.broadcast %cst_5 : f32 to vector<16x128xf32>
    %7 = arith.maximumf %5, %6 : vector<16x128xf32>
    %c0_6 = arith.constant 0 : index
    %c0_7 = arith.constant 0 : index
    %8 = vector.load %arg5[%c0_6, %c0_7] : memref<16x128xf32, #tpu.memory_space<vmem>>, vector<16x128xf32>
    tpu.vector_store %arg5[%c0_6, %c0_7], %7 {strides = array<i32>} : memref<16x128xf32, #tpu.memory_space<vmem>>, vector<16x128xf32>,
    return
  }
  func.func @transform_0(%arg0: i32, %arg1: i32) -> (i32, i32) {
    %c0_i32 = arith.constant 0 : i32
    %c0_i32_0 = arith.constant 0 : i32
    return %arg1, %c0_i32 : i32, i32
  }
  func.func @transform_1(%arg0: i32, %arg1: i32) -> (i32, i32) {
    %c0_i32 = arith.constant 0 : i32
    %c0_i32_0 = arith.constant 0 : i32
    return %c0_i32, %arg0 : i32, i32
  }
  func.func @transform_2(%arg0: i32, %arg1: i32) -> (i32, i32) {
    %c0_i32 = arith.constant 0 : i32
    %c0_i32_0 = arith.constant 0 : i32
    return %c0_i32, %arg0 : i32, i32
  }
  func.func @transform_3(%arg0: i32, %arg1: i32) -> (i32, i32) {
    %c0_i32 = arith.constant 0 : i32
    return %arg1, %arg0 : i32, i32
  }
}

</mosaic_0001>

<llo_original>
// kernel: audio_linear.1
$region0: #{audio_linear.1}
  #allocation0 [shape = 'u32[]', space=smem, size = 0x4, offset = 0x4, fixed_abs, tag = 'smem constant byte address 0x4 - core index']
  #allocation1 [shape = 'u32[144,128]{1,0:T(1,128)}', space=vmem, size = 0x12000, scoped, tag = 'internal scratch']
  %s0 = inlined_call_operand.hbm [shape: f32[16,512], index: 0, kind: input, shape index: {}]
  %s1 = inlined_call_operand.hbm [shape: f32[512,128], index: 1, kind: input, shape index: {}]
  %s2 = inlined_call_operand.vmem [shape: f32[1,128], index: 2, kind: input, shape index: {}]
  %s3 = inlined_call_operand.hbm [shape: f32[16,128], index: 3, kind: output, shape index: {}]
  %s4 = sld [smem:[#allocation0]]
  $region30: #{audio_linear.1} parent=0
    _
  %s6 = ssub.s32 1, %s4
  %s7 = scalar_select 0, %s6, %s4
  $region1: #{audio_linear.1} parent=0
    #allocation2 [shape = 'u8[32768]{0}', space=vmem, size = 0x8000, scoped, tag = 'input window, operand 0, single buffered']
    #allocation3 [shape = 's32[1]{0}', space=sflag, size = 0x4, scoped, tag = 'scoped memory for audio_linear.1']
    #allocation4 [shape = 's32[1]{0}', space=sflag, size = 0x4, scoped, tag = 'scoped memory for audio_linear.1']
    #allocation5 [shape = 'u8[262144]{0}', space=vmem, size = 0x40000, scoped, tag = 'input window, operand 1, single buffered']
    #allocation6 [shape = 's32[1]{0}', space=sflag, size = 0x4, scoped, tag = 'scoped memory for audio_linear.1']
    #allocation7 [shape = 'u8[8192]{0}', space=vmem, size = 0x2000, scoped, tag = 'output window, operand 0, single buffered']
    %8 = vsyncpa [#allocation3], 0
    %9 = vsyncpa [#allocation6], 0
    %10 = vsyncpa [#allocation4], 0
    // Predicated region
    $region2: #{audio_linear.1} parent=1 // pred_check
      _
    $region3: #{audio_linear.1} parent=1 // pred_check_branch
      %12 = sbr.rel (0) target = $region5
    $region4: #{audio_linear.1} parent=1 // pred_region
      %s14 = ssub.s32 1024, 1024
      %15 = vsyncadd [#allocation3], %s14
      %s16 = sshll.u32 [#allocation2], 4
      %s17 = int_to_ptr.vmem [resolvable:$true] %s16
      %22 = dma.hbm_to_vmem [thread:$0]  %s0, 1024, %s17, [#allocation3], 512, 512, 32
    $region5: #{audio_linear.1} parent=1 // pred_fallthru
      _
    // Predicated region
    $region6: #{audio_linear.1} parent=1 // pred_check
      _
    $region7: #{audio_linear.1} parent=1 // pred_check_branch
      %24 = sbr.rel (0) target = $region9
    $region8: #{audio_linear.1} parent=1 // pred_region
      %s26 = ssub.s32 8192, 8192
      %27 = vsyncadd [#allocation6], %s26
      %s28 = sshll.u32 [#allocation5], 4
      %s29 = int_to_ptr.vmem [resolvable:$true] %s28
      %34 = dma.hbm_to_vmem [thread:$0]  %s1, 8192, %s29, [#allocation6], 128, 128, 8
    $region9: #{audio_linear.1} parent=1 // pred_fallthru
      _
    // Predicated region
    $region10: #{audio_linear.1} parent=1 // pred_check
      _
    $region11: #{audio_linear.1} parent=1 // pred_check_branch
      %36 = sbr.rel (0) target = $region13
    $region12: #{audio_linear.1} parent=1 // pred_region
      _
    $region13: #{audio_linear.1} parent=1 // pred_fallthru
      _
    // Predicated region
    $region14: #{audio_linear.1} parent=1 // pred_check
      _
    $region15: #{audio_linear.1} parent=1 // pred_check_branch
      %38 = sbr.rel (0) target = $region17
    $region16: #{audio_linear.1} parent=1 // pred_region
      %39 = dma.done [#allocation3], 1024
    $region17: #{audio_linear.1} parent=1 // pred_fallthru
      _
    // Predicated region
    $region18: #{audio_linear.1} parent=1 // pred_check
      _
    $region19: #{audio_linear.1} parent=1 // pred_check_branch
      %41 = sbr.rel (0) target = $region21
    $region20: #{audio_linear.1} parent=1 // pred_region
      %42 = dma.done [#allocation6], 8192
    $region21: #{audio_linear.1} parent=1 // pred_fallthru
      _
    %v43 = vld [vmem:[#allocation2] sm:$0xff]
    %v44 = vld [vmem:[#allocation2 + $0x8] sm:$0xff]
    %v45 = vld [vmem:[#allocation2 + $0x10] sm:$0xff]
    %v46 = vld [vmem:[#allocation2 + $0x18] sm:$0xff]
    %v47 = vld [vmem:[#allocation2 + $0x20] sm:$0xff]
    %v48 = vld [vmem:[#allocation2 + $0x28] sm:$0xff]
    %v49 = vld [vmem:[#allocation2 + $0x30] sm:$0xff]
    %v50 = vld [vmem:[#allocation2 + $0x38] sm:$0xff]
    %v51 = vld [vmem:[#allocation5] sm:$0xff]
    %v52 = vld [vmem:[#allocation5 + $0x8] sm:$0xff]
    %v53 = vld [vmem:[#allocation5 + $0x10] sm:$0xff]
    %v54 = vld [vmem:[#allocation5 + $0x18] sm:$0xff]
    %v55 = vld [vmem:[#allocation5 + $0x20] sm:$0xff]
    %v56 = vld [vmem:[#allocation5 + $0x28] sm:$0xff]
    %v57 = vld [vmem:[#allocation5 + $0x30] sm:$0xff]
    %v58 = vld [vmem:[#allocation5 + $0x38] sm:$0xff]
    %v59 = vld [vmem:[#allocation5 + $0x40] sm:$0xff]
    %v60 = vld [vmem:[#allocation5 + $0x48] sm:$0xff]
    %v61 = vld [vmem:[#allocation5 + $0x50] sm:$0xff]
    %v62 = vld [vmem:[#allocation5 + $0x58] sm:$0xff]
    %v63 = vld [vmem:[#allocation5 + $0x60] sm:$0xff]
    %v64 = vld [vmem:[#allocation5 + $0x68] sm:$0xff]
    %v65 = vld [vmem:[#allocation5 + $0x70] sm:$0xff]
    %v66 = vld [vmem:[#allocation5 + $0x78] sm:$0xff]
    %v67 = vld [vmem:[#allocation5 + $0x80] sm:$0xff]
    %v68 = vld [vmem:[#allocation5 + $0x88] sm:$0xff]
    %v69 = vld [vmem:[#allocation5 + $0x90] sm:$0xff]
    %v70 = vld [vmem:[#allocation5 + $0x98] sm:$0xff]
    %v71 = vld [vmem:[#allocation5 + $0xa0] sm:$0xff]
    %v72 = vld [vmem:[#allocation5 + $0xa8] sm:$0xff]
    %v73 = vld [vmem:[#allocation5 + $0xb0] sm:$0xff]
    %v74 = vld [vmem:[#allocation5 + $0xb8] sm:$0xff]
    %v75 = vld [vmem:[#allocation5 + $0xc0] sm:$0xff]
    %v76 = vld [vmem:[#allocation5 + $0xc8] sm:$0xff]
    %v77 = vld [vmem:[#allocation5 + $0xd0] sm:$0xff]
    %v78 = vld [vmem:[#allocation5 + $0xd8] sm:$0xff]
    %v79 = vld [vmem:[#allocation5 + $0xe0] sm:$0xff]
    %v80 = vld [vmem:[#allocation5 + $0xe8] sm:$0xff]
    %v81 = vld [vmem:[#allocation5 + $0xf0] sm:$0xff]
    %v82 = vld [vmem:[#allocation5 + $0xf8] sm:$0xff]
    %v83 = vld [vmem:[#allocation5 + $0x100] sm:$0xff]
    %v84 = vld [vmem:[#allocation5 + $0x108] sm:$0xff]
    %v85 = vld [vmem:[#allocation5 + $0x110] sm:$0xff]
    %v86 = vld [vmem:[#allocation5 + $0x118] sm:$0xff]
    %v87 = vld [vmem:[#allocation5 + $0x120] sm:$0xff]
    %v88 = vld [vmem:[#allocation5 + $0x128] sm:$0xff]
    %v89 = vld [vmem:[#allocation5 + $0x130] sm:$0xff]
    %v90 = vld [vmem:[#allocation5 + $0x138] sm:$0xff]
    %v91 = vld [vmem:[#allocation5 + $0x140] sm:$0xff]
    %v92 = vld [vmem:[#allocation5 + $0x148] sm:$0xff]
    %v93 = vld [vmem:[#allocation5 + $0x150] sm:$0xff]
    %v94 = vld [vmem:[#allocation5 + $0x158] sm:$0xff]
    %v95 = vld [vmem:[#allocation5 + $0x160] sm:$0xff]
    %v96 = vld [vmem:[#allocation5 + $0x168] sm:$0xff]
    %v97 = vld [vmem:[#allocation5 + $0x170] sm:$0xff]
    %v98 = vld [vmem:[#allocation5 + $0x178] sm:$0xff]
    %v99 = vld [vmem:[#allocation5 + $0x180] sm:$0xff]
    %v100 = vld [vmem:[#allocation5 + $0x188] sm:$0xff]
    %v101 = vld [vmem:[#allocation5 + $0x190] sm:$0xff]
    %v102 = vld [vmem:[#allocation5 + $0x198] sm:$0xff]
    %v103 = vld [vmem:[#allocation5 + $0x1a0] sm:$0xff]
    %v104 = vld [vmem:[#allocation5 + $0x1a8] sm:$0xff]
    %v105 = vld [vmem:[#allocation5 + $0x1b0] sm:$0xff]
    %v106 = vld [vmem:[#allocation5 + $0x1b8] sm:$0xff]
    %v107 = vld [vmem:[#allocation5 + $0x1c0] sm:$0xff]
    %v108 = vld [vmem:[#allocation5 + $0x1c8] sm:$0xff]
    %v109 = vld [vmem:[#allocation5 + $0x1d0] sm:$0xff]
    %v110 = vld [vmem:[#allocation5 + $0x1d8] sm:$0xff]
    %v111 = vld [vmem:[#allocation5 + $0x1e0] sm:$0xff]
    %v112 = vld [vmem:[#allocation5 + $0x1e8] sm:$0xff]
    %v113 = vld [vmem:[#allocation5 + $0x1f0] sm:$0xff]
    %v114 = vld [vmem:[#allocation5 + $0x1f8] sm:$0xff]
    %v115 = vld [vmem:[%s2] sm:$0x1]
    %v117 = vlaneseq
    %v118 = vshrl.u32 %v117, 7
    %v119 = vsub.s32 0, %v118
    %v120 = vrot.slane %v115, %v119
    %122 = vmatprep.subr.mxu0 0.0
    %123 = vmatpush1.msra.mxu0 %v66
    %124 = vmatprep.subr.mxu0 0.0
    %125 = vmatpush1.msra.mxu0 %v65
    %126 = vmatprep.subr.mxu0 0.0
    %127 = vmatpush1.msra.mxu0 %v64
    %128 = vmatprep.subr.mxu0 0.0
    %129 = vmatpush1.msra.mxu0 %v63
    %130 = vmatprep.subr.mxu0 0.0
    %131 = vmatpush1.msra.mxu0 %v62
    %132 = vmatprep.subr.mxu0 0.0
    %133 = vmatpush1.msra.mxu0 %v61
    %134 = vmatprep.subr.mxu0 0.0
    %135 = vmatpush1.msra.mxu0 %v60
    %136 = vmatprep.subr.mxu0 0.0
    %137 = vmatpush1.msra.mxu0 %v59
    %138 = vmatprep.subr.mxu0 0.0
    %139 = vmatpush1.msra.mxu0 %v58
    %140 = vmatprep.subr.mxu0 0.0
    %141 = vmatpush1.msra.mxu0 %v57
    %142 = vmatprep.subr.mxu0 0.0
    %143 = vmatpush1.msra.mxu0 %v56
    %144 = vmatprep.subr.mxu0 0.0
    %145 = vmatpush1.msra.mxu0 %v55
    %146 = vmatprep.subr.mxu0 0.0
    %147 = vmatpush1.msra.mxu0 %v54
    %148 = vmatprep.subr.mxu0 0.0
    %149 = vmatpush1.msra.mxu0 %v53
    %150 = vmatprep.subr.mxu0 0.0
    %151 = vmatpush1.msra.mxu0 %v52
    %152 = vmatprep.subr.mxu0 0.0
    %153 = vmatpush1.msra.mxu0 %v51
    %154 = vmatprep.subr.mxu0 0.0
    %155 = vmatpush2.msra.mxu0 %v82
    %156 = vmatprep.subr.mxu0 0.0
    %157 = vmatpush2.msra.mxu0 %v81
    %158 = vmatprep.subr.mxu0 0.0
    %159 = vmatpush2.msra.mxu0 %v80
    %160 = vmatprep.subr.mxu0 0.0
    %161 = vmatpush2.msra.mxu0 %v79
    %162 = vmatprep.subr.mxu0 0.0
    %163 = vmatpush2.msra.mxu0 %v78
    %164 = vmatprep.subr.mxu0 0.0
    %165 = vmatpush2.msra.mxu0 %v77
    %166 = vmatprep.subr.mxu0 0.0
    %167 = vmatpush2.msra.mxu0 %v76
    %168 = vmatprep.subr.mxu0 0.0
    %169 = vmatpush2.msra.mxu0 %v75
    %170 = vmatprep.subr.mxu0 0.0
    %171 = vmatpush2.msra.mxu0 %v74
    %172 = vmatprep.subr.mxu0 0.0
    %173 = vmatpush2.msra.mxu0 %v73
    %174 = vmatprep.subr.mxu0 0.0
    %175 = vmatpush2.msra.mxu0 %v72
    %176 = vmatprep.subr.mxu0 0.0
    %177 = vmatpush2.msra.mxu0 %v71
    %178 = vmatprep.subr.mxu0 0.0
    %179 = vmatpush2.msra.mxu0 %v70
    %180 = vmatprep.subr.mxu0 0.0
    %181 = vmatpush2.msra.mxu0 %v69
    %182 = vmatprep.subr.mxu0 0.0
    %183 = vmatpush2.msra.mxu0 %v68
    %184 = vmatprep.subr.mxu0 0.0
    %185 = vmatpush2.msra.mxu0 %v67
    %186 = vmatprep.mubr.f32.mxu0 %v44
    %187 = vmatmul.mubr.f32.gmra.mxu0 %v43
    %v188 = vpop.f32.mrf.mxu0
    %v189 = vadd.f32 %v120, %v188
    %v190 = vpop.f32.mrf.mxu0
    %191 = vmatprep.mubr.f32.mxu0 %v48
    %192 = vmatmul.mubr.f32.gmra.mxu0 %v47
    %v193 = vpop.f32.mrf.mxu0
    %v194 = vadd.f32 %v120, %v193
    %v195 = vpop.f32.mrf.mxu0
    %196 = vdwg.mxu0
    %197 = vmatprep.subr.mxu0 0.0
    %198 = vmatpush1.msra.mxu0 %v98
    %199 = vmatprep.subr.mxu0 0.0
    %200 = vmatpush1.msra.mxu0 %v97
    %201 = vmatprep.subr.mxu0 0.0
    %202 = vmatpush1.msra.mxu0 %v96
    %203 = vmatprep.subr.mxu0 0.0
    %204 = vmatpush1.msra.mxu0 %v95
    %205 = vmatprep.subr.mxu0 0.0
    %206 = vmatpush1.msra.mxu0 %v94
    %207 = vmatprep.subr.mxu0 0.0
    %208 = vmatpush1.msra.mxu0 %v93
    %209 = vmatprep.subr.mxu0 0.0
    %210 = vmatpush1.msra.mxu0 %v92
    %211 = vmatprep.subr.mxu0 0.0
    %212 = vmatpush1.msra.mxu0 %v91
    %213 = vmatprep.subr.mxu0 0.0
    %214 = vmatpush1.msra.mxu0 %v90
    %215 = vmatprep.subr.mxu0 0.0
    %216 = vmatpush1.msra.mxu0 %v89
    %217 = vmatprep.subr.mxu0 0.0
    %218 = vmatpush1.msra.mxu0 %v88
    %219 = vmatprep.subr.mxu0 0.0
    %220 = vmatpush1.msra.mxu0 %v87
    %221 = vmatprep.subr.mxu0 0.0
    %222 = vmatpush1.msra.mxu0 %v86
    %223 = vmatprep.subr.mxu0 0.0
    %224 = vmatpush1.msra.mxu0 %v85
    %225 = vmatprep.subr.mxu0 0.0
    %226 = vmatpush1.msra.mxu0 %v84
    %227 = vmatprep.subr.mxu0 0.0
    %228 = vmatpush1.msra.mxu0 %v83
    %229 = vmatprep.subr.mxu0 0.0
    %230 = vmatpush2.msra.mxu0 %v114
    %231 = vmatprep.subr.mxu0 0.0
    %232 = vmatpush2.msra.mxu0 %v113
    %233 = vmatprep.subr.mxu0 0.0
    %234 = vmatpush2.msra.mxu0 %v112
    %235 = vmatprep.subr.mxu0 0.0
    %236 = vmatpush2.msra.mxu0 %v111
    %237 = vmatprep.subr.mxu0 0.0
    %238 = vmatpush2.msra.mxu0 %v110
    %239 = vmatprep.subr.mxu0 0.0
    %240 = vmatpush2.msra.mxu0 %v109
    %241 = vmatprep.subr.mxu0 0.0
    %242 = vmatpush2.msra.mxu0 %v108
    %243 = vmatprep.subr.mxu0 0.0
    %244 = vmatpush2.msra.mxu0 %v107
    %245 = vmatprep.subr.mxu0 0.0
    %246 = vmatpush2.msra.mxu0 %v106
    %247 = vmatprep.subr.mxu0 0.0
    %248 = vmatpush2.msra.mxu0 %v105
    %249 = vmatprep.subr.mxu0 0.0
    %250 = vmatpush2.msra.mxu0 %v104
    %251 = vmatprep.subr.mxu0 0.0
    %252 = vmatpush2.msra.mxu0 %v103
    %253 = vmatprep.subr.mxu0 0.0
    %254 = vmatpush2.msra.mxu0 %v102
    %255 = vmatprep.subr.mxu0 0.0
    %256 = vmatpush2.msra.mxu0 %v101
    %257 = vmatprep.subr.mxu0 0.0
    %258 = vmatpush2.msra.mxu0 %v100
    %259 = vmatprep.subr.mxu0 0.0
    %260 = vmatpush2.msra.mxu0 %v99
    %261 = vmatprep.mubr.f32.mxu0 %v46
    %262 = vmatmul.mubr.f32.gmra.mxu0 %v45
    %v263 = vpop.f32.mrf.mxu0
    %v264 = vadd.f32 %v189, %v263
    %v265 = vpop.f32.mrf.mxu0
    %266 = vmatprep.mubr.f32.mxu0 %v50
    %267 = vmatmul.mubr.f32.gmra.mxu0 %v49
    %v268 = vpop.f32.mrf.mxu0
    %v269 = vadd.f32 %v194, %v268
    %v270 = vpop.f32.mrf.mxu0
    %271 = vdwg.mxu0
    %v272 = vmax.f32 %v264, 0.0
    %v273 = vmax.f32 %v269, 0.0
    %274 = vst [vmem:[#allocation7] sm:$0xff] %v272
    %275 = vst [vmem:[#allocation7 + $0x8] sm:$0xff] %v273
    // Predicated region
    $region22: #{audio_linear.1} parent=1 // pred_check
      _
    $region23: #{audio_linear.1} parent=1 // pred_check_branch
      %277 = sbr.rel (0) target = $region25
    $region24: #{audio_linear.1} parent=1 // pred_region
      %s279 = ssub.s32 256, 256
      %280 = vsyncadd [#allocation4], %s279
      %s281 = sshll.u32 [#allocation7], 4
      %s282 = int_to_ptr.vmem [resolvable:$true] %s281
      %287 = dma.vmem_to_hbm [thread:$0]  %s282, 256, %s3, [#allocation4], 128, 128, 8
    $region25: #{audio_linear.1} parent=1 // pred_fallthru
      _
    // Predicated region
    $region26: #{audio_linear.1} parent=1 // pred_check
      _
    $region27: #{audio_linear.1} parent=1 // pred_check_branch
      %289 = sbr.rel (0) target = $region29
    $region28: #{audio_linear.1} parent=1 // pred_region
      %290 = dma.done [#allocation4], 256
    $region29: #{audio_linear.1} parent=1 // pred_fallthru
      _
    %291 = vsyncpa [#allocation3], 1
    %292 = vsyncpa [#allocation6], 1
    %293 = vsyncpa [#allocation4], 1

</llo_original>
